<compile_context>
chip_gen: v5e
topology: v5e:2x2
jax: 0.10.0
libtpu: 0.0.40
codegen_flags: <defaults>
</compile_context>

<pallas_src>
import functools

import jax
import jax.numpy as jnp
from jax.experimental import pallas as pl
from jax.experimental.pallas import tpu as pltpu


def _round_up(x: int, m: int) -> int:
    return (x + m - 1) // m * m


def kim_cnn_kernel(x_ref, w_ref, cb_ref, mask_ref, pw_ref, pb_ref, out_ref, *,
                   b_blk, t_out_pad):
    """im2col conv (all windows fused) + bias + ReLU + masked max-over-time + proj.

    Ref shapes (per grid step):
      x_ref   : [b_blk * t_out_pad, K]     bf16  im2col'd embeddings
      w_ref   : [K, n_feat_pad]            bf16  fused conv weight (tap-major rows)
      cb_ref  : [1, n_feat_pad]            f32   conv biases (torch.cat order)
      mask_ref: [t_out_pad, n_feat_pad]    f32   1.0 where the conv position is valid
      pw_ref  : [n_feat_pad, ntags_pad]    f32   projection weight (padded, transposed)
      pb_ref  : [1, ntags_pad]             f32   projection bias (padded)
      out_ref : [b_blk, ntags_pad]         f32
    """
    n_feat_pad = w_ref.shape[-1]

    # One tall lane-dense MXU matmul covers every tap of every window.
    y = jnp.dot(x_ref[...], w_ref[...], preferred_element_type=jnp.float32)
    y = y.reshape(b_blk, t_out_pad, n_feat_pad)          # tile-aligned re-view

    y = jnp.maximum(y + cb_ref[...], 0.0)                # conv bias + ReLU
    # Zero out positions past each window's valid conv length (and padded
    # lanes).  ReLU output is >= 0, so zeros never change the max-over-time.
    y = y * mask_ref[...][None]
    h = jnp.max(y, axis=1)                               # [b_blk, n_feat_pad]

    # TODO(synk): nn.Dropout treated as identity (inference semantics).
    out = jnp.dot(h, pw_ref[...], preferred_element_type=jnp.float32)
    out_ref[...] = (out + pb_ref[...]).astype(out_ref.dtype)


def pack_kim_cnn_params(emb_table, conv_weights, conv_biases, proj_w, proj_b,
                        window_sizes, seq_len, matmul_dtype=jnp.bfloat16):
    """One-time packing of KIM_CNN parameters into kernel-friendly layouts."""
    window_sizes = tuple(int(w) for w in window_sizes)
    ws_max, ws_min = max(window_sizes), min(window_sizes)
    num_filters = conv_weights[0].shape[0]
    emb_size = emb_table.shape[1]
    n_feat = num_filters * len(window_sizes)
    ntags = proj_w.shape[0]
    T = int(seq_len)
    assert T >= ws_max, f"sequence length {T} must be >= largest window {ws_max}"

    k_dim = ws_max * emb_size                 # im2col contraction depth
    n_feat_pad = _round_up(n_feat, 128)       # lane-dense conv feature width
    ntags_pad = _round_up(ntags, 128)         # lane-dense output width
    t_out = T - ws_min + 1
    t_out_pad = _round_up(t_out, 8)

    # Fused im2col conv weight: rows are tap-major (k*E + e), columns are
    # torch.cat feature order (window-major, filter-minor), zero-padded to 128.
    w_full = jnp.zeros((k_dim, n_feat_pad), jnp.float32)
    cb = jnp.zeros((1, n_feat_pad), jnp.float32)
    mask = jnp.zeros((t_out_pad, n_feat_pad), jnp.float32)
    for i, (w, bias, ws) in enumerate(zip(conv_weights, conv_biases,
                                          window_sizes)):
        c0 = i * num_filters
        for k in range(ws):                   # PyTorch Conv1d weight [F, E, ws]
            w_full = w_full.at[k * emb_size:(k + 1) * emb_size,
                               c0:c0 + num_filters].set(
                jnp.transpose(w[:, :, k]).astype(jnp.float32))
        cb = cb.at[0, c0:c0 + num_filters].set(bias.astype(jnp.float32))
        mask = mask.at[:T - ws + 1, c0:c0 + num_filters].set(1.0)

    # PyTorch Linear weight [ntags, n_feat] -> padded, transposed [n_feat_pad, ntags_pad].
    pw = jnp.zeros((n_feat_pad, ntags_pad), jnp.float32)
    pw = pw.at[:n_feat, :ntags].set(jnp.transpose(proj_w).astype(jnp.float32))
    pb = jnp.zeros((1, ntags_pad), jnp.float32)
    pb = pb.at[0, :ntags].set(proj_b.astype(jnp.float32))

    return dict(
        emb_table=emb_table.astype(matmul_dtype),       # bf16 gather, no f32 round-trip
        w_full=w_full.astype(matmul_dtype),
        cb=cb, mask=mask, pw=pw, pb=pb,
        window_sizes=window_sizes, seq_len=T, emb_size=emb_size,
        k_dim=k_dim, n_feat_pad=n_feat_pad, ntags=ntags, ntags_pad=ntags_pad,
        t_out_pad=t_out_pad, ws_max=ws_max, matmul_dtype=matmul_dtype,
    )


def kim_cnn_forward(words, params, *, max_batch_block=1024,
                    vmem_budget_bytes=12 * 1024 * 1024):
    """KIM_CNN forward. `words`: int32 [B, T] with T == params['seq_len']."""
    B, T = words.shape
    assert T == params["seq_len"]
    ws_max = params["ws_max"]
    k_dim = params["k_dim"]
    n_feat_pad = params["n_feat_pad"]
    ntags_pad = params["ntags_pad"]
    t_out_pad = params["t_out_pad"]

    # --- batch block sized from a VMEM budget --------------------------------
    per_row = (2 * t_out_pad * k_dim * 2        # double-buffered bf16 im2col x
               + t_out_pad * n_feat_pad * 4     # f32 conv activations (y)
               + 2 * ntags_pad * 4)             # double-buffered f32 output
    b_ceil = _round_up(B, 8)
    b_blk = max(8, min(max_batch_block,
                       (vmem_budget_bytes // per_row) // 8 * 8,
                       b_ceil))
    if b_ceil // b_blk < 2 and b_blk >= 16:     # keep >=2 grid steps (v7x megacore)
        b_blk = _round_up(b_blk // 2, 8)
    b_pad = _round_up(B, b_blk)

    # --- JAX glue: bf16 embedding gather + im2col -----------------------------
    emb = params["emb_table"][words]                          # [B, T, E]  bf16
    t_need = t_out_pad + ws_max - 1
    emb = jnp.pad(emb, ((0, b_pad - B), (0, t_need - T), (0, 0)))
    x = jnp.concatenate([emb[:, k:k + t_out_pad, :] for k in range(ws_max)],
                        axis=-1)                              # [b_pad, t_out_pad, K]
    x2d = x.reshape(b_pad * t_out_pad, k_dim)

    kernel = functools.partial(kim_cnn_kernel, b_blk=b_blk, t_out_pad=t_out_pad)

    out = pl.pallas_call(
        kernel,
        out_shape=jax.ShapeDtypeStruct((b_pad, ntags_pad), jnp.float32),
        grid=(b_pad // b_blk,),
        in_specs=[
            pl.BlockSpec((b_blk * t_out_pad, k_dim), lambda b: (b, 0)),   # im2col x
            pl.BlockSpec((k_dim, n_feat_pad), lambda b: (0, 0)),          # fused conv W
            pl.BlockSpec((1, n_feat_pad), lambda b: (0, 0)),              # conv bias
            pl.BlockSpec((t_out_pad, n_feat_pad), lambda b: (0, 0)),      # validity mask
            pl.BlockSpec((n_feat_pad, ntags_pad), lambda b: (0, 0)),      # proj W
            pl.BlockSpec((1, ntags_pad), lambda b: (0, 0)),               # proj bias
        ],
        out_specs=pl.BlockSpec((b_blk, ntags_pad), lambda b: (b, 0)),
        compiler_params=pltpu.CompilerParams(
            dimension_semantics=("parallel",),
            vmem_limit_bytes=32 * 1024 * 1024),
    )(x2d, params["w_full"], params["cb"], params["mask"],
      params["pw"], params["pb"])
    return out[:B, :params["ntags"]]


def _reference(words, emb_table, conv_weights, conv_biases, proj_w, proj_b,
               window_sizes):
    """Pure-JAX f32 reference mirroring the PyTorch forward (dropout=identity)."""
    embeds = emb_table[words]                          # [B, T, E]
    x = jnp.transpose(embeds, (0, 2, 1))               # [B, E, T]  (NCW)
    feats = []
    for (w, b), ws in zip(zip(conv_weights, conv_biases), window_sizes):
        y = jax.lax.conv_general_dilated(
            x, w, window_strides=(1,), padding="VALID",
            dimension_numbers=("NCH", "OIH", "NCH"),
        ) + b[None, :, None]                           # [B, F, T_out]
        y = jnp.maximum(y, 0.0)
        feats.append(jnp.max(y, axis=2))               # [B, F]
    h = jnp.concatenate(feats, axis=1)
    return h @ proj_w.T + proj_b


if __name__ == "__main__":
    nwords = 50
    emb_size = 32
    num_filters = 8
    window_sizes = (3, 4, 5)
    ntags = 2
    batch = 2
    seq = 16

    key = jax.random.PRNGKey(0)
    keys = jax.random.split(key, 3 + 2 * len(window_sizes))

    # Embedding: uniform(-0.25, 0.25), padding_idx=0 zeroed.
    emb_table = jax.random.uniform(
        keys[0], (nwords, emb_size), jnp.float32, -0.25, 0.25)
    emb_table = emb_table.at[0].set(0.0)

    # Conv1d params: PyTorch default uniform(-sqrt(k), sqrt(k)), k=1/(E*ws).
    conv_weights, conv_biases = [], []
    for i, ws in enumerate(window_sizes):
        bound = 1.0 / (emb_size * ws) ** 0.5
        conv_weights.append(jax.random.uniform(
            keys[1 + 2 * i], (num_filters, emb_size, ws), jnp.float32,
            -bound, bound))
        conv_biases.append(jax.random.uniform(
            keys[2 + 2 * i], (num_filters,), jnp.float32, -bound, bound))

    # Projection: xavier_uniform weight, PyTorch-default uniform bias.
    in_features = num_filters * len(window_sizes)
    limit = (6.0 / (in_features + ntags)) ** 0.5
    proj_w = jax.random.uniform(
        keys[-2], (ntags, in_features), jnp.float32, -limit, limit)
    b_bound = 1.0 / in_features ** 0.5
    proj_b = jax.random.uniform(
        keys[-1], (ntags,), jnp.float32, -b_bound, b_bound)

    # Deterministic token ids (avoid padding idx 0).
    words = jax.random.randint(
        jax.random.PRNGKey(42), (batch, seq), 1, nwords, dtype=jnp.int32)

    # One-time parameter packing (hoisted out of the per-call path).
    params = pack_kim_cnn_params(
        emb_table, conv_weights, conv_biases, proj_w, proj_b,
        window_sizes, seq_len=seq)

    out = kim_cnn_forward(words, params)
    out = jax.block_until_ready(out)

    ref = _reference(
        words, emb_table, conv_weights, conv_biases, proj_w, proj_b,
        window_sizes)
    assert out.shape == (batch, ntags)
    # Conv matmul runs with bf16 operands (f32 accumulation) -> bf16-level tol.
    assert jnp.allclose(out, ref, atol=1e-2, rtol=1e-2), (
        f"max abs err {jnp.max(jnp.abs(out - ref))}")

    print("KERNEL_OK")
</pallas_src>

<mosaic_0001>
module attributes {stable_mosaic.version = 11 : i64} {
  func.func @kim_cnn_kernel(%arg0: i32, %arg1: memref<128x160xbf16, #tpu.memory_space<vmem>>, %arg2: memref<160x128xbf16, #tpu.memory_space<vmem>>, %arg3: memref<1x128xf32, #tpu.memory_space<vmem>>, %arg4: memref<16x128xf32, #tpu.memory_space<vmem>>, %arg5: memref<128x128xf32, #tpu.memory_space<vmem>>, %arg6: memref<1x128xf32, #tpu.memory_space<vmem>>, %arg7: memref<8x128xf32, #tpu.memory_space<vmem>>) attributes {dimension_semantics = [#tpu.dimension_semantics<parallel>], iteration_bounds = array<i64: 1>, scalar_prefetch = 0 : i64, scratch_operands = 0 : i64, tpu.core_type = #tpu.core_type<tc>, window_params = [{transform_indices = @transform_0, window_bounds = array<i64: 128, 160>}, {pipeline_mode = #tpu.pipeline_mode<synchronous>, transform_indices = @transform_1, window_bounds = array<i64: 160, 128>}, {pipeline_mode = #tpu.pipeline_mode<synchronous>, transform_indices = @transform_2, window_bounds = array<i64: 1, 128>}, {pipeline_mode = #tpu.pipeline_mode<synchronous>, transform_indices = @transform_3, window_bounds = array<i64: 16, 128>}, {pipeline_mode = #tpu.pipeline_mode<synchronous>, transform_indices = @transform_4, window_bounds = array<i64: 128, 128>}, {pipeline_mode = #tpu.pipeline_mode<synchronous>, transform_indices = @transform_5, window_bounds = array<i64: 1, 128>}, {transform_indices = @transform_6, window_bounds = array<i64: 8, 128>}]} {
    %c0 = arith.constant 0 : index
    %c0_0 = arith.constant 0 : index
    %0 = vector.load %arg1[%c0, %c0_0] : memref<128x160xbf16, #tpu.memory_space<vmem>>, vector<128x160xbf16>
    %c0_1 = arith.constant 0 : index
    %c0_2 = arith.constant 0 : index
    %1 = vector.load %arg2[%c0_1, %c0_2] : memref<160x128xbf16, #tpu.memory_space<vmem>>, vector<160x128xbf16>
    %cst = arith.constant dense<0.000000e+00> : vector<128x128xf32>
    %2 = tpu.matmul %0, %1, %cst {dimension_numbers = #tpu.dot_dimension_numbers<[1], [0], [0], [1], [0, 0, 1, 1], [], []>} : vector<128x160xbf16>, vector<160x128xbf16>, vector<128x128xf32> -> vector<128x128xf32>
    %3 = vector.shape_cast %2 : vector<128x128xf32> to vector<8x16x128xf32>
    %c0_3 = arith.constant 0 : index
    %c0_4 = arith.constant 0 : index
    %4 = vector.load %arg3[%c0_3, %c0_4] : memref<1x128xf32, #tpu.memory_space<vmem>>, vector<1x128xf32>
    %5 = vector.shape_cast %4 : vector<1x128xf32> to vector<1x1x128xf32>
    %6 = vector.broadcast %5 : vector<1x1x128xf32> to vector<8x16x128xf32>
    %7 = arith.addf %3, %6 : vector<8x16x128xf32>
    %cst_5 = arith.constant 0.000000e+00 : f32
    %8 = vector.broadcast %cst_5 : f32 to vector<8x16x128xf32>
    %9 = arith.maximumf %7, %8 : vector<8x16x128xf32>
    %c0_6 = arith.constant 0 : index
    %c0_7 = arith.constant 0 : index
    %10 = vector.load %arg4[%c0_6, %c0_7] : memref<16x128xf32, #tpu.memory_space<vmem>>, vector<16x128xf32>
    %11 = vector.shape_cast %10 : vector<16x128xf32> to vector<1x16x128xf32>
    %12 = vector.broadcast %11 : vector<1x16x128xf32> to vector<8x16x128xf32>
    %13 = arith.mulf %9, %12 : vector<8x16x128xf32>
    %cst_8 = arith.constant dense<0xFF800000> : vector<8x128xf32>
    %14 = vector.multi_reduction <maximumf>, %13, %cst_8 [1] : vector<8x16x128xf32> to vector<8x128xf32>
    %c0_9 = arith.constant 0 : index
    %c0_10 = arith.constant 0 : index
    %15 = vector.load %arg5[%c0_9, %c0_10] : memref<128x128xf32, #tpu.memory_space<vmem>>, vector<128x128xf32>
    %cst_11 = arith.constant dense<0.000000e+00> : vector<8x128xf32>
    %16 = tpu.matmul %14, %15, %cst_11 {dimension_numbers = #tpu.dot_dimension_numbers<[1], [0], [0], [1], [0, 0, 1, 1], [], []>} : vector<8x128xf32>, vector<128x128xf32>, vector<8x128xf32> -> vector<8x128xf32>
    %c0_12 = arith.constant 0 : index
    %c0_13 = arith.constant 0 : index
    %17 = vector.load %arg6[%c0_12, %c0_13] : memref<1x128xf32, #tpu.memory_space<vmem>>, vector<1x128xf32>
    %18 = vector.broadcast %17 : vector<1x128xf32> to vector<8x128xf32>
    %19 = arith.addf %16, %18 : vector<8x128xf32>
    %c0_14 = arith.constant 0 : index
    %c0_15 = arith.constant 0 : index
    %20 = vector.load %arg7[%c0_14, %c0_15] : memref<8x128xf32, #tpu.memory_space<vmem>>, vector<8x128xf32>
    tpu.vector_store %arg7[%c0_14, %c0_15], %19 {strides = array<i32>} : memref<8x128xf32, #tpu.memory_space<vmem>>, vector<8x128xf32>,
    return
  }
  func.func @transform_0(%arg0: i32) -> (i32, i32) {
    %c0_i32 = arith.constant 0 : i32
    %c0_i32_0 = arith.constant 0 : i32
    return %arg0, %c0_i32 : i32, i32
  }
  func.func @transform_1(%arg0: i32) -> (i32, i32) {
    %c0_i32 = arith.constant 0 : i32
    %c0_i32_0 = arith.constant 0 : i32
    %c0_i32_1 = arith.constant 0 : i32
    return %c0_i32, %c0_i32_0 : i32, i32
  }
  func.func @transform_2(%arg0: i32) -> (i32, i32) {
    %c0_i32 = arith.constant 0 : i32
    %c0_i32_0 = arith.constant 0 : i32
    %c0_i32_1 = arith.constant 0 : i32
    return %c0_i32, %c0_i32_0 : i32, i32
  }
  func.func @transform_3(%arg0: i32) -> (i32, i32) {
    %c0_i32 = arith.constant 0 : i32
    %c0_i32_0 = arith.constant 0 : i32
    %c0_i32_1 = arith.constant 0 : i32
    return %c0_i32, %c0_i32_0 : i32, i32
  }
  func.func @transform_4(%arg0: i32) -> (i32, i32) {
    %c0_i32 = arith.constant 0 : i32
    %c0_i32_0 = arith.constant 0 : i32
    %c0_i32_1 = arith.constant 0 : i32
    return %c0_i32, %c0_i32_0 : i32, i32
  }
  func.func @transform_5(%arg0: i32) -> (i32, i32) {
    %c0_i32 = arith.constant 0 : i32
    %c0_i32_0 = arith.constant 0 : i32
    %c0_i32_1 = arith.constant 0 : i32
    return %c0_i32, %c0_i32_0 : i32, i32
  }
  func.func @transform_6(%arg0: i32) -> (i32, i32) {
    %c0_i32 = arith.constant 0 : i32
    %c0_i32_0 = arith.constant 0 : i32
    return %arg0, %c0_i32 : i32, i32
  }
}

</mosaic_0001>

<llo_original>
// kernel: tpu_custom_call.1
$region0: #{tpu_custom_call.1}
  #allocation0 [shape = 'u32[]', space=smem, size = 0x4, offset = 0x4, fixed_abs, tag = 'smem constant byte address 0x4 - core index']
  #allocation1 [shape = 'u32[72,128]{1,0:T(1,128)}', space=vmem, size = 0x9000, scoped, tag = 'internal scratch']
  %s0 = inlined_call_operand.vmem [shape: bf16[128,160], index: 0, kind: input, shape index: {}]
  %s1 = inlined_call_operand.vmem [shape: bf16[160,128], index: 1, kind: input, shape index: {}]
  %s2 = inlined_call_operand.vmem [shape: f32[1,128], index: 2, kind: input, shape index: {}]
  %s3 = inlined_call_operand.hbm [shape: f32[16,128], index: 3, kind: input, shape index: {}]
  %s4 = inlined_call_operand.vmem [shape: f32[128,128], index: 4, kind: input, shape index: {}]
  %s5 = inlined_call_operand.vmem [shape: f32[1,128], index: 5, kind: input, shape index: {}]
  %s6 = inlined_call_operand.hbm [shape: f32[8,128], index: 6, kind: output, shape index: {}]
  %s7 = sld [smem:[#allocation0]]
  $region38: #{tpu_custom_call.1} parent=0
    _
  %s9 = ssub.s32 1, %s7
  %s10 = scalar_select 0, %s9, %s7
  $region1: #{tpu_custom_call.1} parent=0
    #allocation2 [shape = 'u8[8192]{0}', space=vmem, size = 0x2000, scoped, tag = 'input window, operand 3, single buffered']
    #allocation3 [shape = 's32[1]{0}', space=sflag, size = 0x4, scoped, tag = 'scoped memory for tpu_custom_call.1']
    #allocation4 [shape = 's32[1]{0}', space=sflag, size = 0x4, scoped, tag = 'scoped memory for tpu_custom_call.1']
    #allocation5 [shape = 'u8[4096]{0}', space=vmem, size = 0x1000, scoped, tag = 'output window, operand 0, single buffered']
    %11 = vsyncpa [#allocation3], 0
    %12 = vsyncpa [#allocation4], 0
    // Predicated region
    $region2: #{tpu_custom_call.1} parent=1 // pred_check
      _
    $region3: #{tpu_custom_call.1} parent=1 // pred_check_branch
      %14 = sbr.rel (0) target = $region5
    $region4: #{tpu_custom_call.1} parent=1 // pred_region
      _
    $region5: #{tpu_custom_call.1} parent=1 // pred_fallthru
      _
    // Predicated region
    $region6: #{tpu_custom_call.1} parent=1 // pred_check
      _
    $region7: #{tpu_custom_call.1} parent=1 // pred_check_branch
      %16 = sbr.rel (0) target = $region9
    $region8: #{tpu_custom_call.1} parent=1 // pred_region
      _
    $region9: #{tpu_custom_call.1} parent=1 // pred_fallthru
      _
    // Predicated region
    $region10: #{tpu_custom_call.1} parent=1 // pred_check
      _
    $region11: #{tpu_custom_call.1} parent=1 // pred_check_branch
      %18 = sbr.rel (0) target = $region13
    $region12: #{tpu_custom_call.1} parent=1 // pred_region
      _
    $region13: #{tpu_custom_call.1} parent=1 // pred_fallthru
      _
    // Predicated region
    $region14: #{tpu_custom_call.1} parent=1 // pred_check
      _
    $region15: #{tpu_custom_call.1} parent=1 // pred_check_branch
      %20 = sbr.rel (0) target = $region17
    $region16: #{tpu_custom_call.1} parent=1 // pred_region
      %22 = vsyncadd [#allocation3], 0
      %s23 = sshll.u32 %s3, 4
      %s24 = int_to_ptr.hbm [resolvable:$true] %s23
      %s25 = sshll.u32 [#allocation2], 4
      %s26 = int_to_ptr.vmem [resolvable:$true] %s25
      %31 = dma.hbm_to_vmem [thread:$0]  %s24, 256, %s26, [#allocation3], 128, 128, 8
    $region17: #{tpu_custom_call.1} parent=1 // pred_fallthru
      _
    // Predicated region
    $region18: #{tpu_custom_call.1} parent=1 // pred_check
      _
    $region19: #{tpu_custom_call.1} parent=1 // pred_check_branch
      %33 = sbr.rel (0) target = $region21
    $region20: #{tpu_custom_call.1} parent=1 // pred_region
      _
    $region21: #{tpu_custom_call.1} parent=1 // pred_fallthru
      _
    // Predicated region
    $region22: #{tpu_custom_call.1} parent=1 // pred_check
      _
    $region23: #{tpu_custom_call.1} parent=1 // pred_check_branch
      %35 = sbr.rel (0) target = $region25
    $region24: #{tpu_custom_call.1} parent=1 // pred_region
      _
    $region25: #{tpu_custom_call.1} parent=1 // pred_fallthru
      _
    // Predicated region
    $region26: #{tpu_custom_call.1} parent=1 // pred_check
      _
    $region27: #{tpu_custom_call.1} parent=1 // pred_check_branch
      %37 = sbr.rel (0) target = $region29
    $region28: #{tpu_custom_call.1} parent=1 // pred_region
      %39 = dma.done [#allocation3], 256
    $region29: #{tpu_custom_call.1} parent=1 // pred_fallthru
      _
    %v41 = vld [vmem:[%s0] sm:$0xff]
    %v42 = vld [vmem:[%s0 + $0x8] sm:$0xff]
    %v43 = vld [vmem:[%s0 + $0x10] sm:$0xff]
    %v44 = vld [vmem:[%s0 + $0x18] sm:$0xff]
    %v45 = vld [vmem:[%s0 + $0x20] sm:$0xff]
    %v46 = vld [vmem:[%s0 + $0x28] sm:$0xff]
    %v47 = vld [vmem:[%s0 + $0x30] sm:$0xff]
    %v48 = vld [vmem:[%s0 + $0x38] sm:$0xff]
    %v49 = vld [vmem:[%s0 + $0x40] sm:$0xff]
    %v50 = vld [vmem:[%s0 + $0x48] sm:$0xff]
    %v51 = vld [vmem:[%s0 + $0x50] sm:$0xff]
    %v52 = vld [vmem:[%s0 + $0x58] sm:$0xff]
    %v53 = vld [vmem:[%s0 + $0x60] sm:$0xff]
    %v54 = vld [vmem:[%s0 + $0x68] sm:$0xff]
    %v55 = vld [vmem:[%s0 + $0x70] sm:$0xff]
    %v56 = vld [vmem:[%s0 + $0x78] sm:$0xff]
    %v57 = vld [vmem:[%s1] sm:$0xf]
    %v58 = vld [vmem:[%s1 + $0x4] sm:$0xf]
    %v59 = vld [vmem:[%s1 + $0x8] sm:$0xf]
    %v60 = vld [vmem:[%s1 + $0xc] sm:$0xf]
    %v61 = vld [vmem:[%s1 + $0x10] sm:$0xf]
    %v62 = vld [vmem:[%s1 + $0x14] sm:$0xf]
    %v63 = vld [vmem:[%s1 + $0x18] sm:$0xf]
    %v64 = vld [vmem:[%s1 + $0x1c] sm:$0xf]
    %v65 = vld [vmem:[%s1 + $0x20] sm:$0xf]
    %v66 = vld [vmem:[%s1 + $0x24] sm:$0xf]
    %v67 = vld [vmem:[%s1 + $0x28] sm:$0xf]
    %v68 = vld [vmem:[%s1 + $0x2c] sm:$0xf]
    %v69 = vld [vmem:[%s1 + $0x30] sm:$0xf]
    %v70 = vld [vmem:[%s1 + $0x34] sm:$0xf]
    %v71 = vld [vmem:[%s1 + $0x38] sm:$0xf]
    %v72 = vld [vmem:[%s1 + $0x3c] sm:$0xf]
    %v73 = vld [vmem:[%s1 + $0x40] sm:$0xf]
    %v74 = vld [vmem:[%s1 + $0x44] sm:$0xf]
    %v75 = vld [vmem:[%s1 + $0x48] sm:$0xf]
    %v76 = vld [vmem:[%s1 + $0x4c] sm:$0xf]
    %v93 = vunpack.c.l.b16 %v41
    %v94 = vunpack.c.h.b16 %v41
    %v95 = vunpack.c.l.b16 %v42
    %v96 = vunpack.c.h.b16 %v42
    %v97 = vunpack.c.l.b16 %v43
    %v98 = vunpack.c.h.b16 %v43
    %v99 = vunpack.c.l.b16 %v44
    %v100 = vunpack.c.h.b16 %v44
    %v101 = vunpack.c.l.b16 %v45
    %v102 = vunpack.c.h.b16 %v45
    %v103 = vunpack.c.l.b16 %v46
    %v104 = vunpack.c.h.b16 %v46
    %v105 = vunpack.c.l.b16 %v47
    %v106 = vunpack.c.h.b16 %v47
    %v107 = vunpack.c.l.b16 %v48
    %v108 = vunpack.c.h.b16 %v48
    %v109 = vunpack.c.l.b16 %v49
    %v110 = vunpack.c.h.b16 %v49
    %v111 = vunpack.c.l.b16 %v50
    %v112 = vunpack.c.h.b16 %v50
    %v113 = vunpack.c.l.b16 %v51
    %v114 = vunpack.c.h.b16 %v51
    %v115 = vunpack.c.l.b16 %v52
    %v116 = vunpack.c.h.b16 %v52
    %v117 = vunpack.c.l.b16 %v53
    %v118 = vunpack.c.h.b16 %v53
    %v119 = vunpack.c.l.b16 %v54
    %v120 = vunpack.c.h.b16 %v54
    %v121 = vunpack.c.l.b16 %v55
    %v122 = vunpack.c.h.b16 %v55
    %v123 = vunpack.c.l.b16 %v56
    %v124 = vunpack.c.h.b16 %v56
    %v125 = vpack.c.b16 %v95, %v93
    %v126 = vpack.c.b16 %v96, %v94
    %v127 = vpack.c.b16 %v99, %v97
    %v128 = vpack.c.b16 %v100, %v98
    %v129 = vpack.c.b16 %v103, %v101
    %v130 = vpack.c.b16 %v104, %v102
    %v131 = vpack.c.b16 %v107, %v105
    %v132 = vpack.c.b16 %v108, %v106
    %v133 = vpack.c.b16 %v111, %v109
    %v134 = vpack.c.b16 %v112, %v110
    %v135 = vpack.c.b16 %v115, %v113
    %v136 = vpack.c.b16 %v116, %v114
    %v137 = vpack.c.b16 %v119, %v117
    %v138 = vpack.c.b16 %v120, %v118
    %v139 = vpack.c.b16 %v123, %v121
    %v140 = vpack.c.b16 %v124, %v122
    %v169 = vunpack.c.l.b16 %v57
    %v170 = vunpack.c.l.b16 %v58
    %v171 = vunpack.c.l.b16 %v59
    %v172 = vunpack.c.l.b16 %v60
    %v173 = vunpack.c.l.b16 %v61
    %v174 = vunpack.c.l.b16 %v62
    %v175 = vunpack.c.l.b16 %v63
    %v176 = vunpack.c.l.b16 %v64
    %v177 = vunpack.c.l.b16 %v65
    %v178 = vunpack.c.l.b16 %v66
    %v179 = vunpack.c.l.b16 %v67
    %v180 = vunpack.c.l.b16 %v68
    %v181 = vunpack.c.l.b16 %v69
    %v182 = vunpack.c.l.b16 %v70
    %v183 = vunpack.c.l.b16 %v71
    %v184 = vunpack.c.l.b16 %v72
    %v185 = vunpack.c.l.b16 %v73
    %v186 = vunpack.c.l.b16 %v74
    %v187 = vunpack.c.l.b16 %v75
    %v188 = vunpack.c.l.b16 %v76
    %v189 = vpack.c.b16 %v170, %v169
    %v190 = vpack.c.b16 %v172, %v171
    %v191 = vpack.c.b16 %v174, %v173
    %v192 = vpack.c.b16 %v176, %v175
    %v193 = vpack.c.b16 %v178, %v177
    %v194 = vpack.c.b16 %v180, %v179
    %v195 = vpack.c.b16 %v182, %v181
    %v196 = vpack.c.b16 %v184, %v183
    %v197 = vpack.c.b16 %v186, %v185
    %v198 = vpack.c.b16 %v188, %v187
    %vm209 = vcmask 261120
    %v211 = vsel %vm209, %v126, 0
    %v214 = vsel %vm209, %v128, 0
    %v217 = vsel %vm209, %v130, 0
    %v220 = vsel %vm209, %v132, 0
    %v223 = vsel %vm209, %v134, 0
    %v226 = vsel %vm209, %v136, 0
    %v229 = vsel %vm209, %v138, 0
    %v232 = vsel %vm209, %v140, 0
    %234 = vmatpush.bf16.msra.mxu0 %v196
    %235 = vmatpush.bf16.msra.mxu0 %v195
    %236 = vmatpush.bf16.msra.mxu0 %v194
    %237 = vmatpush.bf16.msra.mxu0 %v193
    %238 = vmatpush.bf16.msra.mxu0 %v192
    %239 = vmatpush.bf16.msra.mxu0 %v191
    %240 = vmatpush.bf16.msra.mxu0 %v190
    %241 = vmatpush.bf16.msra.mxu0 %v189
    %242 = vmatmul.bf16.gmra.mxu0 %v125
    %v243 = vpop.f32.mrf.mxu0
    %v244 = vadd.f32 0.0, %v243
    %v245 = vpop.f32.mrf.mxu0
    %v246 = vadd.f32 0.0, %v245
    %247 = vmatmul.bf16.gmra.mxu0 %v127
    %v248 = vpop.f32.mrf.mxu0
    %v249 = vadd.f32 0.0, %v248
    %v250 = vpop.f32.mrf.mxu0
    %v251 = vadd.f32 0.0, %v250
    %252 = vmatmul.bf16.gmra.mxu0 %v129
    %v253 = vpop.f32.mrf.mxu0
    %v254 = vadd.f32 0.0, %v253
    %v255 = vpop.f32.mrf.mxu0
    %v256 = vadd.f32 0.0, %v255
    %257 = vmatmul.bf16.gmra.mxu0 %v131
    %v258 = vpop.f32.mrf.mxu0
    %v259 = vadd.f32 0.0, %v258
    %v260 = vpop.f32.mrf.mxu0
    %v261 = vadd.f32 0.0, %v260
    %262 = vmatmul.bf16.gmra.mxu0 %v133
    %v263 = vpop.f32.mrf.mxu0
    %v264 = vadd.f32 0.0, %v263
    %v265 = vpop.f32.mrf.mxu0
    %v266 = vadd.f32 0.0, %v265
    %267 = vmatmul.bf16.gmra.mxu0 %v135
    %v268 = vpop.f32.mrf.mxu0
    %v269 = vadd.f32 0.0, %v268
    %v270 = vpop.f32.mrf.mxu0
    %v271 = vadd.f32 0.0, %v270
    %272 = vmatmul.bf16.gmra.mxu0 %v137
    %v273 = vpop.f32.mrf.mxu0
    %v274 = vadd.f32 0.0, %v273
    %v275 = vpop.f32.mrf.mxu0
    %v276 = vadd.f32 0.0, %v275
    %277 = vmatmul.bf16.gmra.mxu0 %v139
    %v278 = vpop.f32.mrf.mxu0
    %v279 = vadd.f32 0.0, %v278
    %v280 = vpop.f32.mrf.mxu0
    %v281 = vadd.f32 0.0, %v280
    %282 = vdwg.mxu0
    %283 = vmatpush.bf16.msra.mxu0 0
    %284 = vmatpush.bf16.msra.mxu0 0
    %285 = vmatpush.bf16.msra.mxu0 0
    %286 = vmatpush.bf16.msra.mxu0 0
    %287 = vmatpush.bf16.msra.mxu0 0
    %288 = vmatpush.bf16.msra.mxu0 0
    %289 = vmatpush.bf16.msra.mxu0 %v198
    %290 = vmatpush.bf16.msra.mxu0 %v197
    %291 = vmatmul.bf16.gmra.mxu0 %v211
    %v292 = vpop.f32.mrf.mxu0
    %v293 = vadd.f32 %v244, %v292
    %v294 = vpop.f32.mrf.mxu0
    %v295 = vadd.f32 %v246, %v294
    %296 = vmatmul.bf16.gmra.mxu0 %v214
    %v297 = vpop.f32.mrf.mxu0
    %v298 = vadd.f32 %v249, %v297
    %v299 = vpop.f32.mrf.mxu0
    %v300 = vadd.f32 %v251, %v299
    %301 = vmatmul.bf16.gmra.mxu0 %v217
    %v302 = vpop.f32.mrf.mxu0
    %v303 = vadd.f32 %v254, %v302
    %v304 = vpop.f32.mrf.mxu0
    %v305 = vadd.f32 %v256, %v304
    %306 = vmatmul.bf16.gmra.mxu0 %v220
    %v307 = vpop.f32.mrf.mxu0
    %v308 = vadd.f32 %v259, %v307
    %v309 = vpop.f32.mrf.mxu0
    %v310 = vadd.f32 %v261, %v309
    %311 = vmatmul.bf16.gmra.mxu0 %v223
    %v312 = vpop.f32.mrf.mxu0
    %v313 = vadd.f32 %v264, %v312
    %v314 = vpop.f32.mrf.mxu0
    %v315 = vadd.f32 %v266, %v314
    %316 = vmatmul.bf16.gmra.mxu0 %v226
    %v317 = vpop.f32.mrf.mxu0
    %v318 = vadd.f32 %v269, %v317
    %v319 = vpop.f32.mrf.mxu0
    %v320 = vadd.f32 %v271, %v319
    %321 = vmatmul.bf16.gmra.mxu0 %v229
    %v322 = vpop.f32.mrf.mxu0
    %v323 = vadd.f32 %v274, %v322
    %v324 = vpop.f32.mrf.mxu0
    %v325 = vadd.f32 %v276, %v324
    %326 = vmatmul.bf16.gmra.mxu0 %v232
    %v327 = vpop.f32.mrf.mxu0
    %v328 = vadd.f32 %v279, %v327
    %v329 = vpop.f32.mrf.mxu0
    %v330 = vadd.f32 %v281, %v329
    %331 = vdwg.mxu0
    %v332 = vld [vmem:[%s2] sm:$0x1]
    %v334 = vperm.slane %v332, 0
    %v336 = vadd.f32 %v293, %v334
    %v337 = vadd.f32 %v295, %v334
    %v338 = vadd.f32 %v298, %v334
    %v339 = vadd.f32 %v300, %v334
    %v340 = vadd.f32 %v303, %v334
    %v341 = vadd.f32 %v305, %v334
    %v342 = vadd.f32 %v308, %v334
    %v343 = vadd.f32 %v310, %v334
    %v344 = vadd.f32 %v313, %v334
    %v345 = vadd.f32 %v315, %v334
    %v346 = vadd.f32 %v318, %v334
    %v347 = vadd.f32 %v320, %v334
    %v348 = vadd.f32 %v323, %v334
    %v349 = vadd.f32 %v325, %v334
    %v350 = vadd.f32 %v328, %v334
    %v351 = vadd.f32 %v330, %v334
    %v352 = vmax.f32 %v336, 0.0
    %v353 = vmax.f32 %v337, 0.0
    %v354 = vmax.f32 %v338, 0.0
    %v355 = vmax.f32 %v339, 0.0
    %v356 = vmax.f32 %v340, 0.0
    %v357 = vmax.f32 %v341, 0.0
    %v358 = vmax.f32 %v342, 0.0
    %v359 = vmax.f32 %v343, 0.0
    %v360 = vmax.f32 %v344, 0.0
    %v361 = vmax.f32 %v345, 0.0
    %v362 = vmax.f32 %v346, 0.0
    %v363 = vmax.f32 %v347, 0.0
    %v364 = vmax.f32 %v348, 0.0
    %v365 = vmax.f32 %v349, 0.0
    %v366 = vmax.f32 %v350, 0.0
    %v367 = vmax.f32 %v351, 0.0
    %v368 = vld [vmem:[#allocation2] sm:$0xff]
    %v369 = vld [vmem:[#allocation2 + $0x8] sm:$0xff]
    %v370 = vmul.f32 %v352, %v368
    %v371 = vmul.f32 %v353, %v369
    %v372 = vmul.f32 %v354, %v368
    %v373 = vmul.f32 %v355, %v369
    %v374 = vmul.f32 %v356, %v368
    %v375 = vmul.f32 %v357, %v369
    %v376 = vmul.f32 %v358, %v368
    %v377 = vmul.f32 %v359, %v369
    %v378 = vmul.f32 %v360, %v368
    %v379 = vmul.f32 %v361, %v369
    %v380 = vmul.f32 %v362, %v368
    %v381 = vmul.f32 %v363, %v369
    %v382 = vmul.f32 %v364, %v368
    %v383 = vmul.f32 %v365, %v369
    %v384 = vmul.f32 %v366, %v368
    %v385 = vmul.f32 %v367, %v369
    %v386 = vmax.f32 %v370, %v371
    %v387 = vrot.slane %v386, 4
    %v388 = vmax.f32 %v386, %v387
    %v389 = vrot.slane %v388, 2
    %v390 = vmax.f32 %v388, %v389
    %v391 = vrot.slane %v390, 1
    %v392 = vmax.f32 %v390, %v391
    %v393 = vmax.f32 %v372, %v373
    %v394 = vrot.slane %v393, 4
    %v395 = vmax.f32 %v393, %v394
    %v396 = vrot.slane %v395, 2
    %v397 = vmax.f32 %v395, %v396
    %v398 = vrot.slane %v397, 1
    %v399 = vmax.f32 %v397, %v398
    %v400 = vmax.f32 %v374, %v375
    %v401 = vrot.slane %v400, 4
    %v402 = vmax.f32 %v400, %v401
    %v403 = vrot.slane %v402, 2
    %v404 = vmax.f32 %v402, %v403
    %v405 = vrot.slane %v404, 1
    %v406 = vmax.f32 %v404, %v405
    %v407 = vmax.f32 %v376, %v377
    %v408 = vrot.slane %v407, 4
    %v409 = vmax.f32 %v407, %v408
    %v410 = vrot.slane %v409, 2
    %v411 = vmax.f32 %v409, %v410
    %v412 = vrot.slane %v411, 1
    %v413 = vmax.f32 %v411, %v412
    %v414 = vmax.f32 %v378, %v379
    %v415 = vrot.slane %v414, 4
    %v416 = vmax.f32 %v414, %v415
    %v417 = vrot.slane %v416, 2
    %v418 = vmax.f32 %v416, %v417
    %v419 = vrot.slane %v418, 1
    %v420 = vmax.f32 %v418, %v419
    %v421 = vmax.f32 %v380, %v381
    %v422 = vrot.slane %v421, 4
    %v423 = vmax.f32 %v421, %v422
    %v424 = vrot.slane %v423, 2
    %v425 = vmax.f32 %v423, %v424
    %v426 = vrot.slane %v425, 1
    %v427 = vmax.f32 %v425, %v426
    %v428 = vmax.f32 %v382, %v383
    %v429 = vrot.slane %v428, 4
    %v430 = vmax.f32 %v428, %v429
    %v431 = vrot.slane %v430, 2
    %v432 = vmax.f32 %v430, %v431
    %v433 = vrot.slane %v432, 1
    %v434 = vmax.f32 %v432, %v433
    %v435 = vmax.f32 %v384, %v385
    %v436 = vrot.slane %v435, 4
    %v437 = vmax.f32 %v435, %v436
    %v438 = vrot.slane %v437, 2
    %v439 = vmax.f32 %v437, %v438
    %v440 = vrot.slane %v439, 1
    %v441 = vmax.f32 %v439, %v440
    %v442 = vld [vmem:[%s4] sm:$0xff]
    %v443 = vld [vmem:[%s4 + $0x8] sm:$0xff]
    %v444 = vld [vmem:[%s4 + $0x10] sm:$0xff]
    %v445 = vld [vmem:[%s4 + $0x18] sm:$0xff]
    %v446 = vld [vmem:[%s4 + $0x20] sm:$0xff]
    %v447 = vld [vmem:[%s4 + $0x28] sm:$0xff]
    %v448 = vld [vmem:[%s4 + $0x30] sm:$0xff]
    %v449 = vld [vmem:[%s4 + $0x38] sm:$0xff]
    %v450 = vld [vmem:[%s4 + $0x40] sm:$0xff]
    %v451 = vld [vmem:[%s4 + $0x48] sm:$0xff]
    %v452 = vld [vmem:[%s4 + $0x50] sm:$0xff]
    %v453 = vld [vmem:[%s4 + $0x58] sm:$0xff]
    %v454 = vld [vmem:[%s4 + $0x60] sm:$0xff]
    %v455 = vld [vmem:[%s4 + $0x68] sm:$0xff]
    %v456 = vld [vmem:[%s4 + $0x70] sm:$0xff]
    %v457 = vld [vmem:[%s4 + $0x78] sm:$0xff]
    %v458 = vld [vmem:[%s5] sm:$0x1]
    %v460 = vperm.slane %v458, 0
    %vm470 = vcmask 1041409
    %v471 = vsel %vm470, %v399, %v392
    %vm472 = vcmask 1042434
    %v473 = vsel %vm472, %v406, %v471
    %vm474 = vcmask 1043459
    %v475 = vsel %vm474, %v413, %v473
    %vm476 = vcmask 1044484
    %v477 = vsel %vm476, %v420, %v475
    %vm478 = vcmask 1045509
    %v479 = vsel %vm478, %v427, %v477
    %vm480 = vcmask 1046534
    %v481 = vsel %vm480, %v434, %v479
    %vm482 = vcmask 1047559
    %v483 = vsel %vm482, %v441, %v481
    %485 = vmatpush.msra.mxu0 %v457
    %486 = vmatpush.msra.mxu0 %v456
    %487 = vmatpush.msra.mxu0 %v455
    %488 = vmatpush.msra.mxu0 %v454
    %489 = vmatpush.msra.mxu0 %v453
    %490 = vmatpush.msra.mxu0 %v452
    %491 = vmatpush.msra.mxu0 %v451
    %492 = vmatpush.msra.mxu0 %v450
    %493 = vmatpush.msra.mxu0 %v449
    %494 = vmatpush.msra.mxu0 %v448
    %495 = vmatpush.msra.mxu0 %v447
    %496 = vmatpush.msra.mxu0 %v446
    %497 = vmatpush.msra.mxu0 %v445
    %498 = vmatpush.msra.mxu0 %v444
    %499 = vmatpush.msra.mxu0 %v443
    %500 = vmatpush.msra.mxu0 %v442
    %501 = vmatmul.f32.gmra.mxu0 %v483
    %v502 = vpop.f32.mrf.mxu0
    %v503 = vadd.f32 %v460, %v502
    %504 = vdwg.mxu0
    %505 = vst [vmem:[#allocation5] sm:$0xff] %v503
    // Predicated region
    $region30: #{tpu_custom_call.1} parent=1 // pred_check
      _
    $region31: #{tpu_custom_call.1} parent=1 // pred_check_branch
      %507 = sbr.rel (0) target = $region33
    $region32: #{tpu_custom_call.1} parent=1 // pred_region
      %509 = vsyncadd [#allocation4], 0
      %s511 = sshll.u32 [#allocation5], 4
      %s512 = int_to_ptr.vmem [resolvable:$true] %s511
      %s513 = sshll.u32 %s6, 4
      %s514 = int_to_ptr.hbm [resolvable:$true] %s513
      %516 = dma.vmem_to_hbm [thread:$0]  %s512, 128, %s514, [#allocation4]
    $region33: #{tpu_custom_call.1} parent=1 // pred_fallthru
      _
    // Predicated region
    $region34: #{tpu_custom_call.1} parent=1 // pred_check
      _
    $region35: #{tpu_custom_call.1} parent=1 // pred_check_branch
      %518 = sbr.rel (0) target = $region37
    $region36: #{tpu_custom_call.1} parent=1 // pred_region
      %520 = dma.done [#allocation4], 128
    $region37: #{tpu_custom_call.1} parent=1 // pred_fallthru
      _
    %521 = vsyncpa [#allocation3], 1
    %522 = vsyncpa [#allocation4], 1

</llo_original>
